<compile_context>
chip_gen: v7x
topology: tpu7x:2x2x1
jax: 0.10.0
libtpu: 0.0.40
codegen_flags: <defaults>
</compile_context>

<pallas_src>
import math

import jax
import jax.numpy as jnp
from jax.experimental import pallas as pl
from jax.experimental.pallas import tpu as pltpu


def _pe_cat_kernel(x_ref, pe_ref, wx_ref, o_ref):
    # x_ref : (TB, TL, Dp)  compute dtype
    # pe_ref: (TL, Dp)      f32   (pe @ Wpe + bias, batch-invariant)
    # wx_ref: (Dp, Dp)      compute dtype
    # o_ref : (TB, TL, Dp)  output dtype
    pe = pe_ref[...]
    w = wx_ref[...]
    for b in range(x_ref.shape[0]):          # static unroll over batch items in the block
        acc = jnp.dot(x_ref[b], w, preferred_element_type=jnp.float32)
        o_ref[b] = (acc + pe).astype(o_ref.dtype)


def make_pe_cat_params(weight, bias, pe_full, *, compute_dtype=None):
    """One-time (cacheable) preprocessing of the static parameters.

    weight: (D, 2D) nn.Linear weight; bias: (D,); pe_full: (max_len, D).
    Returns a dict reusable across forward calls (feedback: hoist pe@Wpe+b once).
    """
    D = weight.shape[0]
    assert weight.shape[1] == 2 * D, "cat_linear must map 2*d_model -> d_model"

    w_dtype = compute_dtype if compute_dtype is not None else weight.dtype
    wx = weight[:, :D].T.astype(w_dtype)                                # (D, D)
    wpe = weight[:, D:].T.astype(jnp.float32)                           # (D, D)
    pe_proj_full = (pe_full.astype(jnp.float32) @ wpe
                    + bias.astype(jnp.float32))                         # (max_len, D) f32

    # Lane-packing factor for D < 128 (only when it tiles 128 exactly).
    G = 128 // D if (D < 128 and 128 % D == 0) else 1
    wx_packed = jnp.kron(jnp.eye(G, dtype=wx.dtype), wx) if G > 1 else None  # (G*D, G*D)

    return {"wx": wx, "wx_packed": wx_packed, "pe_proj_full": pe_proj_full,
            "G": G, "compute_dtype": compute_dtype}


def _round_down_mult(x, m):
    return (x // m) * m


def positional_encoding_1d_cat(x, params, *, target_tile_bytes=2 << 20):
    """Fused cat(x, pe) -> Linear(2D -> D).  x: (B, L, D)."""
    B, L, D = x.shape
    out_dtype = x.dtype
    compute_dtype = params["compute_dtype"]
    if compute_dtype is not None:
        x = x.astype(compute_dtype)

    pe_proj = params["pe_proj_full"][:L]                    # (L, D) f32, cheap slice

    # Lane-dense packing (D < 128): last dim of every operand becomes exactly 128.
    G = params["G"]
    use_pack = G > 1 and (L % G == 0)
    if use_pack:
        Lp, Dp = L // G, G * D
        x_k = x.reshape(B, Lp, Dp)                          # contiguous -> free
        pe_k = pe_proj.reshape(Lp, Dp)
        wx_k = params["wx_packed"]
    else:
        Lp, Dp = L, D
        x_k, pe_k, wx_k = x, pe_proj, params["wx"]

    isz_x = jnp.dtype(x_k.dtype).itemsize
    isz_o = jnp.dtype(out_dtype).itemsize
    isz_w = jnp.dtype(wx_k.dtype).itemsize

    # ---- tile selection by bytes (not rows) ----
    row_bytes = Dp * isz_x
    rows_budget = max(8, _round_down_mult(target_tile_bytes // row_bytes, 8))
    if Lp <= rows_budget:
        TL = Lp                                             # whole sequence per step
        want_tb = min(B, max(1, int(target_tile_bytes // max(1, Lp * row_bytes))))
        TB = max(d for d in range(1, want_tb + 1) if B % d == 0)  # divisor of B
    else:
        TL = rows_budget                                    # multiple of 8
        TB = 1
    n_l = pl.cdiv(Lp, TL)
    n_b = pl.cdiv(B, TB)

    # ---- explicit VMEM budget (double-buffered x / pe / out, weight buffers) ----
    vmem_bytes = (2 * TB * TL * Dp * isz_x
                  + 2 * TL * Dp * 4
                  + 2 * TB * TL * Dp * isz_o
                  + 2 * Dp * Dp * isz_w)
    vmem_limit = int(min(vmem_bytes + (8 << 20), 48 << 20))

    # bytes_accessed matches the (n_l, n_b) grid order: pe_proj and Wx fetched once.
    cost = pl.CostEstimate(
        flops=2 * B * Lp * Dp * Dp,
        transcendentals=0,
        bytes_accessed=(B * Lp * Dp * isz_x        # x read
                        + B * Lp * Dp * isz_o      # out write
                        + Lp * Dp * 4              # pe_proj read (once)
                        + Dp * Dp * isz_w),        # Wx read (once)
    )

    out = pl.pallas_call(
        _pe_cat_kernel,
        out_shape=jax.ShapeDtypeStruct((B, Lp, Dp), out_dtype),
        grid=(n_l, n_b),                            # batch innermost: pe/Wx not re-DMAed
        in_specs=[
            pl.BlockSpec((TB, TL, Dp), lambda l, b: (b, l, 0)),   # x tile
            pl.BlockSpec((TL, Dp), lambda l, b: (l, 0)),          # pe_proj tile (const over b)
            pl.BlockSpec((Dp, Dp), lambda l, b: (0, 0)),          # Wx (const over whole grid)
        ],
        out_specs=pl.BlockSpec((TB, TL, Dp), lambda l, b: (b, l, 0)),
        compiler_params=pltpu.CompilerParams(
            dimension_semantics=("parallel", "parallel"),
            vmem_limit_bytes=vmem_limit),
        cost_estimate=cost,
    )(x_k, pe_k, wx_k)

    return out.reshape(B, L, D) if use_pack else out


def positional_encoding_1d_cat_forward(x, pe_full, weight, bias, *,
                                        compute_dtype=None, target_tile_bytes=2 << 20):
    """Convenience one-shot wrapper (prefer caching make_pe_cat_params across calls)."""
    params = make_pe_cat_params(weight, bias, pe_full, compute_dtype=compute_dtype)
    return positional_encoding_1d_cat(x, params, target_tile_bytes=target_tile_bytes)


def make_pe_buffer(d_model, max_len=1000, dtype=jnp.float32):
    """Exactly reproduces the PyTorch sin/cos positional-encoding buffer (even d_model)."""
    assert d_model % 2 == 0, "this PE recipe requires even d_model"
    position = jnp.arange(0, max_len, dtype=dtype)[:, None]            # (max_len, 1)
    div_term = jnp.exp(
        jnp.arange(0, d_model, 2, dtype=dtype) * -(math.log(10000.0) / d_model)
    )                                                                  # (d_model/2,)
    angles = position * div_term                                       # (max_len, d/2)
    pe = jnp.zeros((max_len, d_model), dtype=dtype)
    pe = pe.at[:, 0::2].set(jnp.sin(angles))
    pe = pe.at[:, 1::2].set(jnp.cos(angles))
    return pe


def init_linear_params(key, in_features, out_features, dtype=jnp.float32):
    """Deterministic nn.Linear-style init: U(-1/sqrt(fan_in), 1/sqrt(fan_in))."""
    kw, kb = jax.random.split(key)
    bound = 1.0 / math.sqrt(in_features)
    weight = jax.random.uniform(
        kw, (out_features, in_features), dtype=dtype, minval=-bound, maxval=bound)
    bias = jax.random.uniform(
        kb, (out_features,), dtype=dtype, minval=-bound, maxval=bound)
    return weight, bias


def reference_forward(x, pe_full, weight, bias):
    B, L, D = x.shape
    pe = jnp.broadcast_to(pe_full[None, :L, :], x.shape)
    cat = jnp.concatenate([x, pe], axis=-1)                 # (B, L, 2D)
    return cat @ weight.T + bias


if __name__ == "__main__":
    d_model = 32
    max_len = 1000
    B, L = 2, 8

    key = jax.random.PRNGKey(0)
    kx, kparams = jax.random.split(key)

    x = jax.random.normal(kx, (B, L, d_model), dtype=jnp.float32)
    pe_full = make_pe_buffer(d_model, max_len)
    weight, bias = init_linear_params(kparams, 2 * d_model, d_model)

    ref = reference_forward(x, pe_full, weight, bias)

    # f32 path with cached params (lane-packed: G = 4 -> kernel last dim 128).
    params = make_pe_cat_params(weight, bias, pe_full)
    out = jax.block_until_ready(positional_encoding_1d_cat(x, params))
    assert out.shape == (B, L, d_model), out.shape
    assert jnp.allclose(out, ref, atol=1e-5, rtol=1e-5), "f32 mismatch vs reference"

    # bf16 MXU path (x / Wx in bf16, f32 accumulation, pe half stays f32).
    params_bf16 = make_pe_cat_params(weight, bias, pe_full, compute_dtype=jnp.bfloat16)
    out_bf16 = jax.block_until_ready(positional_encoding_1d_cat(x, params_bf16))
    assert jnp.allclose(out_bf16, ref, atol=5e-2, rtol=5e-2), "bf16 mismatch vs reference"

    # Non-packed fallback path (L not divisible by G) still matches the reference.
    L2 = 7
    x2 = jax.random.normal(kx, (B, L2, d_model), dtype=jnp.float32)
    ref2 = reference_forward(x2, pe_full, weight, bias)
    out2 = jax.block_until_ready(positional_encoding_1d_cat(x2, params))
    assert out2.shape == (B, L2, d_model), out2.shape
    assert jnp.allclose(out2, ref2, atol=1e-5, rtol=1e-5), "fallback mismatch vs reference"

    print("KERNEL_OK")
</pallas_src>

<mosaic_0001>
module attributes {stable_mosaic.version = 11 : i64} {
  func.func @_pe_cat_kernel(%arg0: i32, %arg1: i32, %arg2: memref<2x2x128xf32, #tpu.memory_space<vmem>>, %arg3: memref<2x128xf32, #tpu.memory_space<vmem>>, %arg4: memref<128x128xf32, #tpu.memory_space<vmem>>, %arg5: memref<2x2x128xf32, #tpu.memory_space<vmem>>) attributes {dimension_semantics = [#tpu.dimension_semantics<parallel>, #tpu.dimension_semantics<parallel>], iteration_bounds = array<i64: 1, 1>, scalar_prefetch = 0 : i64, scratch_operands = 0 : i64, tpu.core_type = #tpu.core_type<tc>, window_params = [{transform_indices = @transform_0, window_bounds = array<i64: 2, 2, 128>}, {transform_indices = @transform_1, window_bounds = array<i64: 2, 128>}, {pipeline_mode = #tpu.pipeline_mode<synchronous>, transform_indices = @transform_2, window_bounds = array<i64: 128, 128>}, {transform_indices = @transform_3, window_bounds = array<i64: 2, 2, 128>}]} {
    %c0 = arith.constant 0 : index
    %c0_0 = arith.constant 0 : index
    %0 = vector.load %arg3[%c0, %c0_0] : memref<2x128xf32, #tpu.memory_space<vmem>>, vector<2x128xf32>
    %c0_1 = arith.constant 0 : index
    %c0_2 = arith.constant 0 : index
    %1 = vector.load %arg4[%c0_1, %c0_2] : memref<128x128xf32, #tpu.memory_space<vmem>>, vector<128x128xf32>
    %c0_3 = arith.constant 0 : index
    %c0_4 = arith.constant 0 : index
    %c0_5 = arith.constant 0 : index
    %2 = vector.load %arg2[%c0_3, %c0_4, %c0_5] : memref<2x2x128xf32, #tpu.memory_space<vmem>>, vector<1x2x128xf32>
    %3 = vector.shape_cast %2 : vector<1x2x128xf32> to vector<2x128xf32>
    %cst = arith.constant dense<0.000000e+00> : vector<2x128xf32>
    %4 = tpu.matmul %3, %1, %cst {dimension_numbers = #tpu.dot_dimension_numbers<[1], [0], [0], [1], [0, 0, 1, 1], [], []>} : vector<2x128xf32>, vector<128x128xf32>, vector<2x128xf32> -> vector<2x128xf32>
    %5 = arith.addf %4, %0 : vector<2x128xf32>
    %c0_6 = arith.constant 0 : index
    %c0_7 = arith.constant 0 : index
    %c0_8 = arith.constant 0 : index
    %6 = vector.load %arg5[%c0_6, %c0_7, %c0_8] : memref<2x2x128xf32, #tpu.memory_space<vmem>>, vector<1x2x128xf32>
    %7 = vector.shape_cast %6 : vector<1x2x128xf32> to vector<2x128xf32>
    %8 = vector.shape_cast %5 : vector<2x128xf32> to vector<1x2x128xf32>
    tpu.vector_store %arg5[%c0_6, %c0_7, %c0_8], %8 {strides = array<i32>} : memref<2x2x128xf32, #tpu.memory_space<vmem>>, vector<1x2x128xf32>,
    %c1 = arith.constant 1 : index
    %c0_9 = arith.constant 0 : index
    %c0_10 = arith.constant 0 : index
    %9 = vector.load %arg2[%c1, %c0_9, %c0_10] : memref<2x2x128xf32, #tpu.memory_space<vmem>>, vector<1x2x128xf32>
    %10 = vector.shape_cast %9 : vector<1x2x128xf32> to vector<2x128xf32>
    %cst_11 = arith.constant dense<0.000000e+00> : vector<2x128xf32>
    %11 = tpu.matmul %10, %1, %cst_11 {dimension_numbers = #tpu.dot_dimension_numbers<[1], [0], [0], [1], [0, 0, 1, 1], [], []>} : vector<2x128xf32>, vector<128x128xf32>, vector<2x128xf32> -> vector<2x128xf32>
    %12 = arith.addf %11, %0 : vector<2x128xf32>
    %c1_12 = arith.constant 1 : index
    %c0_13 = arith.constant 0 : index
    %c0_14 = arith.constant 0 : index
    %13 = vector.load %arg5[%c1_12, %c0_13, %c0_14] : memref<2x2x128xf32, #tpu.memory_space<vmem>>, vector<1x2x128xf32>
    %14 = vector.shape_cast %13 : vector<1x2x128xf32> to vector<2x128xf32>
    %15 = vector.shape_cast %12 : vector<2x128xf32> to vector<1x2x128xf32>
    tpu.vector_store %arg5[%c1_12, %c0_13, %c0_14], %15 {strides = array<i32>} : memref<2x2x128xf32, #tpu.memory_space<vmem>>, vector<1x2x128xf32>,
    return
  }
  func.func @transform_0(%arg0: i32, %arg1: i32) -> (i32, i32, i32) {
    %c0_i32 = arith.constant 0 : i32
    %c0_i32_0 = arith.constant 0 : i32
    return %arg1, %arg0, %c0_i32 : i32, i32, i32
  }
  func.func @transform_1(%arg0: i32, %arg1: i32) -> (i32, i32) {
    %c0_i32 = arith.constant 0 : i32
    %c0_i32_0 = arith.constant 0 : i32
    return %arg0, %c0_i32 : i32, i32
  }
  func.func @transform_2(%arg0: i32, %arg1: i32) -> (i32, i32) {
    %c0_i32 = arith.constant 0 : i32
    %c0_i32_0 = arith.constant 0 : i32
    %c0_i32_1 = arith.constant 0 : i32
    return %c0_i32, %c0_i32_0 : i32, i32
  }
  func.func @transform_3(%arg0: i32, %arg1: i32) -> (i32, i32, i32) {
    %c0_i32 = arith.constant 0 : i32
    %c0_i32_0 = arith.constant 0 : i32
    return %arg1, %arg0, %c0_i32 : i32, i32, i32
  }
}

</mosaic_0001>

<llo_original>
// kernel: tpu_custom_call.1
$region0: #{tpu_custom_call.1}
  #allocation0 [shape = 'u32[]', space=smem, size = 0x4, offset = 0x4, fixed_abs, tag = 'smem constant byte address 0x4 - core index']
  #allocation1 [shape = 'u32[144,128]{1,0:T(1,128)}', space=vmem, size = 0x12000, scoped, tag = 'internal scratch']
  %s0 = inlined_call_operand.hbm [shape: f32[2,2,128], index: 0, kind: input, shape index: {}]
  %s1 = inlined_call_operand.vmem [shape: f32[2,128], index: 1, kind: input, shape index: {}]
  %s2 = inlined_call_operand.hbm [shape: f32[128,128], index: 2, kind: input, shape index: {}]
  %s3 = inlined_call_operand.hbm [shape: f32[2,2,128], index: 3, kind: output, shape index: {}]
  %s4 = sld [smem:[#allocation0]]
  $region30: #{tpu_custom_call.1} parent=0
    _
  %s6 = ssub.s32 1, %s4
  %s7 = scalar_select 0, %s6, %s4
  $region1: #{tpu_custom_call.1} parent=0
    #allocation2 [shape = 'u8[2048]{0}', space=vmem, size = 0x800, scoped, tag = 'input window, operand 0, single buffered']
    #allocation3 [shape = 's32[1]{0}', space=sflag, size = 0x4, scoped, tag = 'scoped memory for tpu_custom_call.1']
    #allocation4 [shape = 's32[1]{0}', space=sflag, size = 0x4, scoped, tag = 'scoped memory for tpu_custom_call.1']
    #allocation5 [shape = 'u8[65536]{0}', space=vmem, size = 0x10000, scoped, tag = 'input window, operand 2, single buffered']
    #allocation6 [shape = 's32[1]{0}', space=sflag, size = 0x4, scoped, tag = 'scoped memory for tpu_custom_call.1']
    #allocation7 [shape = 'u8[2048]{0}', space=vmem, size = 0x800, scoped, tag = 'output window, operand 0, single buffered']
    %8 = vsyncpa [#allocation3], 0
    %9 = vsyncpa [#allocation6], 0
    %10 = vsyncpa [#allocation4], 0
    // Predicated region
    $region2: #{tpu_custom_call.1} parent=1 // pred_check
      _
    $region3: #{tpu_custom_call.1} parent=1 // pred_check_branch
      %12 = sbr.rel (0) target = $region5
    $region4: #{tpu_custom_call.1} parent=1 // pred_region
      %s14 = ssub.s32 64, 64
      %15 = vsyncadd [#allocation3], %s14
      %s16 = sshll.u32 [#allocation2], 4
      %s17 = int_to_ptr.vmem [resolvable:$true] %s16
      %22 = dma.hbm_to_vmem [thread:$0]  %s0, 64, %s17, [#allocation3], 32, 32, 2
    $region5: #{tpu_custom_call.1} parent=1 // pred_fallthru
      _
    // Predicated region
    $region6: #{tpu_custom_call.1} parent=1 // pred_check
      _
    $region7: #{tpu_custom_call.1} parent=1 // pred_check_branch
      %24 = sbr.rel (0) target = $region9
    $region8: #{tpu_custom_call.1} parent=1 // pred_region
      _
    $region9: #{tpu_custom_call.1} parent=1 // pred_fallthru
      _
    // Predicated region
    $region10: #{tpu_custom_call.1} parent=1 // pred_check
      _
    $region11: #{tpu_custom_call.1} parent=1 // pred_check_branch
      %26 = sbr.rel (0) target = $region13
    $region12: #{tpu_custom_call.1} parent=1 // pred_region
      %s28 = ssub.s32 2048, 2048
      %29 = vsyncadd [#allocation6], %s28
      %s30 = sshll.u32 [#allocation5], 4
      %s31 = int_to_ptr.vmem [resolvable:$true] %s30
      %36 = dma.hbm_to_vmem [thread:$0]  %s2, 2048, %s31, [#allocation6], 128, 128, 8
    $region13: #{tpu_custom_call.1} parent=1 // pred_fallthru
      _
    // Predicated region
    $region14: #{tpu_custom_call.1} parent=1 // pred_check
      _
    $region15: #{tpu_custom_call.1} parent=1 // pred_check_branch
      %38 = sbr.rel (0) target = $region17
    $region16: #{tpu_custom_call.1} parent=1 // pred_region
      %39 = dma.done [#allocation3], 64
    $region17: #{tpu_custom_call.1} parent=1 // pred_fallthru
      _
    // Predicated region
    $region18: #{tpu_custom_call.1} parent=1 // pred_check
      _
    $region19: #{tpu_custom_call.1} parent=1 // pred_check_branch
      %41 = sbr.rel (0) target = $region21
    $region20: #{tpu_custom_call.1} parent=1 // pred_region
      %42 = dma.done [#allocation6], 2048
    $region21: #{tpu_custom_call.1} parent=1 // pred_fallthru
      _
    %v43 = vld [vmem:[%s1] sm:$0x3]
    %v44 = vld [vmem:[#allocation5] sm:$0xff]
    %v45 = vld [vmem:[#allocation5 + $0x8] sm:$0xff]
    %v46 = vld [vmem:[#allocation5 + $0x10] sm:$0xff]
    %v47 = vld [vmem:[#allocation5 + $0x18] sm:$0xff]
    %v48 = vld [vmem:[#allocation5 + $0x20] sm:$0xff]
    %v49 = vld [vmem:[#allocation5 + $0x28] sm:$0xff]
    %v50 = vld [vmem:[#allocation5 + $0x30] sm:$0xff]
    %v51 = vld [vmem:[#allocation5 + $0x38] sm:$0xff]
    %v52 = vld [vmem:[#allocation5 + $0x40] sm:$0xff]
    %v53 = vld [vmem:[#allocation5 + $0x48] sm:$0xff]
    %v54 = vld [vmem:[#allocation5 + $0x50] sm:$0xff]
    %v55 = vld [vmem:[#allocation5 + $0x58] sm:$0xff]
    %v56 = vld [vmem:[#allocation5 + $0x60] sm:$0xff]
    %v57 = vld [vmem:[#allocation5 + $0x68] sm:$0xff]
    %v58 = vld [vmem:[#allocation5 + $0x70] sm:$0xff]
    %v59 = vld [vmem:[#allocation5 + $0x78] sm:$0xff]
    %v60 = vld [vmem:[#allocation2] sm:$0x3]
    %61 = vmatprep.subr.mxu0 0.0
    %62 = vmatpush1.msra.mxu0 %v44
    %63 = vmatprep.subr.mxu0 0.0
    %64 = vmatpush1.msra.mxu0 %v45
    %65 = vmatprep.subr.mxu0 0.0
    %66 = vmatpush1.msra.mxu0 %v46
    %67 = vmatprep.subr.mxu0 0.0
    %68 = vmatpush1.msra.mxu0 %v47
    %69 = vmatprep.subr.mxu0 0.0
    %70 = vmatpush1.msra.mxu0 %v48
    %71 = vmatprep.subr.mxu0 0.0
    %72 = vmatpush1.msra.mxu0 %v49
    %73 = vmatprep.subr.mxu0 0.0
    %74 = vmatpush1.msra.mxu0 %v50
    %75 = vmatprep.subr.mxu0 0.0
    %76 = vmatpush1.msra.mxu0 %v51
    %77 = vmatprep.subr.mxu0 0.0
    %78 = vmatpush1.msra.mxu0 %v52
    %79 = vmatprep.subr.mxu0 0.0
    %80 = vmatpush1.msra.mxu0 %v53
    %81 = vmatprep.subr.mxu0 0.0
    %82 = vmatpush1.msra.mxu0 %v54
    %83 = vmatprep.subr.mxu0 0.0
    %84 = vmatpush1.msra.mxu0 %v55
    %85 = vmatprep.subr.mxu0 0.0
    %86 = vmatpush1.msra.mxu0 %v56
    %87 = vmatprep.subr.mxu0 0.0
    %88 = vmatpush1.msra.mxu0 %v57
    %89 = vmatprep.subr.mxu0 0.0
    %90 = vmatpush1.msra.mxu0 %v58
    %91 = vmatprep.subr.mxu0 0.0
    %92 = vmatpush1.msra.mxu0 %v59
    %93 = vmatprep.subr.mxu0 0.0
    %94 = vmatpush1.msra.mxu0 0.0
    %95 = vmatprep.subr.mxu0 0.0
    %96 = vmatpush1.msra.mxu0 0.0
    %97 = vmatprep.subr.mxu0 0.0
    %98 = vmatpush1.msra.mxu0 0.0
    %99 = vmatprep.subr.mxu0 0.0
    %100 = vmatpush1.msra.mxu0 0.0
    %101 = vmatprep.subr.mxu0 0.0
    %102 = vmatpush1.msra.mxu0 0.0
    %103 = vmatprep.subr.mxu0 0.0
    %104 = vmatpush1.msra.mxu0 0.0
    %105 = vmatprep.subr.mxu0 0.0
    %106 = vmatpush1.msra.mxu0 0.0
    %107 = vmatprep.subr.mxu0 0.0
    %108 = vmatpush1.msra.mxu0 0.0
    %109 = vmatprep.subr.mxu0 0.0
    %110 = vmatpush1.msra.mxu0 0.0
    %111 = vmatprep.subr.mxu0 0.0
    %112 = vmatpush1.msra.mxu0 0.0
    %113 = vmatprep.subr.mxu0 0.0
    %114 = vmatpush1.msra.mxu0 0.0
    %115 = vmatprep.subr.mxu0 0.0
    %116 = vmatpush1.msra.mxu0 0.0
    %117 = vmatprep.subr.mxu0 0.0
    %118 = vmatpush1.msra.mxu0 0.0
    %119 = vmatprep.subr.mxu0 0.0
    %120 = vmatpush1.msra.mxu0 0.0
    %121 = vmatprep.subr.mxu0 0.0
    %122 = vmatpush1.msra.mxu0 0.0
    %123 = vmatprep.subr.mxu0 0.0
    %124 = vmatpush1.msra.mxu0 0.0
    %125 = vmatprep.mubr.f32.mxu0 0.0
    %126 = vmatmul.mubr.f32.gmra.mrb[0].mxu0 %v60
    %v127 = vpop.f32.mrb[0].mxu0
    %v128 = vadd.f32 %v43, %v127
    %v129 = vpop.f32.mrb[0].mxu0
    %130 = vdwg.mxu0
    %131 = vst [vmem:[#allocation7] sm:$0x3] %v128
    %s132 = scalar_lea.vmem [#allocation2], 2
    %v133 = vld [vmem:[%s132] sm:$0x3]
    %134 = vmatprep.subr.mxu0 0.0
    %135 = vmatpush1.msra.mxu0 %v44
    %136 = vmatprep.subr.mxu0 0.0
    %137 = vmatpush1.msra.mxu0 %v45
    %138 = vmatprep.subr.mxu0 0.0
    %139 = vmatpush1.msra.mxu0 %v46
    %140 = vmatprep.subr.mxu0 0.0
    %141 = vmatpush1.msra.mxu0 %v47
    %142 = vmatprep.subr.mxu0 0.0
    %143 = vmatpush1.msra.mxu0 %v48
    %144 = vmatprep.subr.mxu0 0.0
    %145 = vmatpush1.msra.mxu0 %v49
    %146 = vmatprep.subr.mxu0 0.0
    %147 = vmatpush1.msra.mxu0 %v50
    %148 = vmatprep.subr.mxu0 0.0
    %149 = vmatpush1.msra.mxu0 %v51
    %150 = vmatprep.subr.mxu0 0.0
    %151 = vmatpush1.msra.mxu0 %v52
    %152 = vmatprep.subr.mxu0 0.0
    %153 = vmatpush1.msra.mxu0 %v53
    %154 = vmatprep.subr.mxu0 0.0
    %155 = vmatpush1.msra.mxu0 %v54
    %156 = vmatprep.subr.mxu0 0.0
    %157 = vmatpush1.msra.mxu0 %v55
    %158 = vmatprep.subr.mxu0 0.0
    %159 = vmatpush1.msra.mxu0 %v56
    %160 = vmatprep.subr.mxu0 0.0
    %161 = vmatpush1.msra.mxu0 %v57
    %162 = vmatprep.subr.mxu0 0.0
    %163 = vmatpush1.msra.mxu0 %v58
    %164 = vmatprep.subr.mxu0 0.0
    %165 = vmatpush1.msra.mxu0 %v59
    %166 = vmatprep.subr.mxu0 0.0
    %167 = vmatpush1.msra.mxu0 0.0
    %168 = vmatprep.subr.mxu0 0.0
    %169 = vmatpush1.msra.mxu0 0.0
    %170 = vmatprep.subr.mxu0 0.0
    %171 = vmatpush1.msra.mxu0 0.0
    %172 = vmatprep.subr.mxu0 0.0
    %173 = vmatpush1.msra.mxu0 0.0
    %174 = vmatprep.subr.mxu0 0.0
    %175 = vmatpush1.msra.mxu0 0.0
    %176 = vmatprep.subr.mxu0 0.0
    %177 = vmatpush1.msra.mxu0 0.0
    %178 = vmatprep.subr.mxu0 0.0
    %179 = vmatpush1.msra.mxu0 0.0
    %180 = vmatprep.subr.mxu0 0.0
    %181 = vmatpush1.msra.mxu0 0.0
    %182 = vmatprep.subr.mxu0 0.0
    %183 = vmatpush1.msra.mxu0 0.0
    %184 = vmatprep.subr.mxu0 0.0
    %185 = vmatpush1.msra.mxu0 0.0
    %186 = vmatprep.subr.mxu0 0.0
    %187 = vmatpush1.msra.mxu0 0.0
    %188 = vmatprep.subr.mxu0 0.0
    %189 = vmatpush1.msra.mxu0 0.0
    %190 = vmatprep.subr.mxu0 0.0
    %191 = vmatpush1.msra.mxu0 0.0
    %192 = vmatprep.subr.mxu0 0.0
    %193 = vmatpush1.msra.mxu0 0.0
    %194 = vmatprep.subr.mxu0 0.0
    %195 = vmatpush1.msra.mxu0 0.0
    %196 = vmatprep.subr.mxu0 0.0
    %197 = vmatpush1.msra.mxu0 0.0
    %198 = vmatprep.mubr.f32.mxu0 0.0
    %199 = vmatmul.mubr.f32.gmra.mrb[0].mxu0 %v133
    %v200 = vpop.f32.mrb[0].mxu0
    %v201 = vadd.f32 %v43, %v200
    %v202 = vpop.f32.mrb[0].mxu0
    %203 = vdwg.mxu0
    %s204 = scalar_lea.vmem [#allocation7], 2
    %205 = vst [vmem:[%s204] sm:$0x3] %v201
    // Predicated region
    $region22: #{tpu_custom_call.1} parent=1 // pred_check
      _
    $region23: #{tpu_custom_call.1} parent=1 // pred_check_branch
      %207 = sbr.rel (0) target = $region25
    $region24: #{tpu_custom_call.1} parent=1 // pred_region
      %s209 = ssub.s32 64, 64
      %210 = vsyncadd [#allocation4], %s209
      %s211 = sshll.u32 [#allocation7], 4
      %s212 = int_to_ptr.vmem [resolvable:$true] %s211
      %217 = dma.vmem_to_hbm [thread:$0]  %s212, 64, %s3, [#allocation4], 32, 32, 2
    $region25: #{tpu_custom_call.1} parent=1 // pred_fallthru
      _
    // Predicated region
    $region26: #{tpu_custom_call.1} parent=1 // pred_check
      _
    $region27: #{tpu_custom_call.1} parent=1 // pred_check_branch
      %219 = sbr.rel (0) target = $region29
    $region28: #{tpu_custom_call.1} parent=1 // pred_region
      %220 = dma.done [#allocation4], 64
    $region29: #{tpu_custom_call.1} parent=1 // pred_fallthru
      _
    %221 = vsyncpa [#allocation3], 1
    %222 = vsyncpa [#allocation6], 1
    %223 = vsyncpa [#allocation4], 1

</llo_original>
